<compile_context>
chip_gen: v7x
topology: tpu7x:2x2x1
jax: 0.10.0
libtpu: 0.0.40
codegen_flags: <defaults>
</compile_context>

<pallas_src>
import jax
import jax.numpy as jnp
from jax.experimental import pallas as pl
from jax.experimental.pallas import tpu as pltpu

OUTPUT_SIZE = 16  # hidden width of the inner net


def _round_up(n, m):
    return ((n + m - 1) // m) * m


def innernet_kernel(x_ref, params_ref, o_ref):
    # x_ref      : (1, Bt)   f32 -- points on the lane axis
    # params_ref : (16, 4)   f32 -- columns: [w1, b1, w2, b2 (row 0 only)]
    # o_ref      : (1, Bt)   f32
    p = params_ref[...]
    w1 = p[:, 0:1]            # (16, 1)
    b1 = p[:, 1:2]            # (16, 1)
    w2 = p[:, 2:3]            # (16, 1)
    b2 = p[0:1, 3:4]          # (1, 1)

    x = x_ref[...]            # (1, Bt)

    # Layer 1: Linear(1, 16) as an outer product on the VPU, then ReLU.
    h = jnp.maximum(w1 * x + b1, 0.0)                    # (16, Bt)
    # Layer 2: Linear(16, 1) as a 16-wide sublane reduction + bias.
    y = jnp.sum(w2 * h, axis=0, keepdims=True) + b2      # (1, Bt)

    o_ref[...] = y.astype(o_ref.dtype)


def innernet_forward(x, w1, b1, w2, b2, *, b_tile_max=1024):
    """x: (B, 1) float32. Weights in (in, out) layout: w1 (1,16), b1 (1,16),
    w2 (16,1), b2 (1,1). Returns (B, 1)."""
    B = x.shape[0]
    dtype = x.dtype

    # Pack the four tiny parameter tensors into one (16, 4) block so the
    # pipeline keeps them resident (constant index_map, single DMA) instead
    # of four separate double-buffered 64-byte inputs.
    params = jnp.zeros((OUTPUT_SIZE, 4), jnp.float32)
    params = params.at[:, 0].set(w1.reshape(OUTPUT_SIZE))
    params = params.at[:, 1].set(b1.reshape(OUTPUT_SIZE))
    params = params.at[:, 2].set(w2.reshape(OUTPUT_SIZE))
    params = params.at[0, 3].set(b2.reshape(()))

    # Lane-dense layout: batch on the last (lane) axis, padded to the tile.
    # Tile sizing: (1, bt) f32 in + out, double-buffered, is a few KiB even at
    # bt=1024 -- far under the scoped VMEM limit on v5e/v6e/v7x alike.
    bt = min(b_tile_max, _round_up(B, 128))
    B_pad = _round_up(B, bt)
    x_lane = jnp.zeros((1, B_pad), dtype).at[0, :B].set(x.reshape(B))

    out = pl.pallas_call(
        innernet_kernel,
        out_shape=jax.ShapeDtypeStruct((1, B_pad), dtype),
        grid=(B_pad // bt,),
        in_specs=[
            pl.BlockSpec((1, bt), lambda i: (0, i)),            # stream of points
            pl.BlockSpec((OUTPUT_SIZE, 4), lambda i: (0, 0)),   # resident params
        ],
        out_specs=pl.BlockSpec((1, bt), lambda i: (0, i)),
        compiler_params=pltpu.CompilerParams(
            dimension_semantics=("parallel",),
        ),
    )(x_lane, params)

    return out[0, :B].reshape(B, 1)


def init_params(key):
    """Deterministic init mirroring nn.Linear's default U(-1/sqrt(fan_in), +)."""
    k1, k2, k3, k4 = jax.random.split(key, 4)
    # Layer 1: Linear(1, 16)  -> fan_in = 1
    w1 = jax.random.uniform(k1, (1, OUTPUT_SIZE), jnp.float32, -1.0, 1.0)
    b1 = jax.random.uniform(k2, (1, OUTPUT_SIZE), jnp.float32, -1.0, 1.0)
    # Layer 2: Linear(16, 1)  -> fan_in = 16
    bound = 1.0 / jnp.sqrt(float(OUTPUT_SIZE))
    w2 = jax.random.uniform(k3, (OUTPUT_SIZE, 1), jnp.float32, -bound, bound)
    b2 = jax.random.uniform(k4, (1, 1), jnp.float32, -bound, bound)
    return w1, b1, w2, b2


def innernet_reference(x, w1, b1, w2, b2):
    h = jnp.maximum(x @ w1 + b1, 0.0)
    return h @ w2 + b2


if __name__ == "__main__":
    key = jax.random.PRNGKey(0)
    kx1, kx2, kp = jax.random.split(key, 3)
    w1, b1, w2, b2 = init_params(kp)

    # Small batch (pads to one 128-lane tile) and a larger streaming batch
    # (multiple lane-dense tiles, grid > 1) to exercise padding + pipelining.
    for kx, B in ((kx1, 8), (kx2, 3000)):
        x = jax.random.normal(kx, (B, 1), jnp.float32)

        out = innernet_forward(x, w1, b1, w2, b2)
        out = jax.block_until_ready(out)

        ref = innernet_reference(x, w1, b1, w2, b2)
        assert out.shape == (B, 1)
        assert jnp.allclose(out, ref, atol=1e-5, rtol=1e-5), (
            f"mismatch vs reference at B={B}")

    print("KERNEL_OK")
</pallas_src>

<mosaic_0001>
module attributes {stable_mosaic.version = 11 : i64} {
  func.func @innernet_kernel(%arg0: i32, %arg1: memref<1x128xf32, #tpu.memory_space<vmem>>, %arg2: memref<16x4xf32, #tpu.memory_space<vmem>>, %arg3: memref<1x128xf32, #tpu.memory_space<vmem>>) attributes {dimension_semantics = [#tpu.dimension_semantics<parallel>], iteration_bounds = array<i64: 1>, scalar_prefetch = 0 : i64, scratch_operands = 0 : i64, tpu.core_type = #tpu.core_type<tc>, window_params = [{transform_indices = @transform_0, window_bounds = array<i64: 1, 128>}, {pipeline_mode = #tpu.pipeline_mode<synchronous>, transform_indices = @transform_1, window_bounds = array<i64: 16, 4>}, {transform_indices = @transform_2, window_bounds = array<i64: 1, 128>}]} {
    %c0 = arith.constant 0 : index
    %c0_0 = arith.constant 0 : index
    %0 = vector.load %arg2[%c0, %c0_0] : memref<16x4xf32, #tpu.memory_space<vmem>>, vector<16x4xf32>
    %1 = vector.extract_strided_slice %0 {offsets = [0, 0], sizes = [16, 1], strides = [1, 1]} : vector<16x4xf32> to vector<16x1xf32>
    %2 = vector.extract_strided_slice %0 {offsets = [0, 1], sizes = [16, 1], strides = [1, 1]} : vector<16x4xf32> to vector<16x1xf32>
    %3 = vector.extract_strided_slice %0 {offsets = [0, 2], sizes = [16, 1], strides = [1, 1]} : vector<16x4xf32> to vector<16x1xf32>
    %4 = vector.extract_strided_slice %0 {offsets = [0, 3], sizes = [1, 1], strides = [1, 1]} : vector<16x4xf32> to vector<1x1xf32>
    %c0_1 = arith.constant 0 : index
    %c0_2 = arith.constant 0 : index
    %5 = vector.load %arg1[%c0_1, %c0_2] : memref<1x128xf32, #tpu.memory_space<vmem>>, vector<1x128xf32>
    %6 = vector.broadcast %1 : vector<16x1xf32> to vector<16x128xf32>
    %7 = vector.broadcast %5 : vector<1x128xf32> to vector<16x128xf32>
    %8 = arith.mulf %6, %7 : vector<16x128xf32>
    %9 = vector.broadcast %2 : vector<16x1xf32> to vector<16x128xf32>
    %10 = arith.addf %8, %9 : vector<16x128xf32>
    %cst = arith.constant 0.000000e+00 : f32
    %11 = vector.broadcast %cst : f32 to vector<16x128xf32>
    %12 = arith.maximumf %10, %11 : vector<16x128xf32>
    %13 = vector.broadcast %3 : vector<16x1xf32> to vector<16x128xf32>
    %14 = arith.mulf %13, %12 : vector<16x128xf32>
    %cst_3 = arith.constant dense<0.000000e+00> : vector<128xf32>
    %15 = vector.multi_reduction <add>, %14, %cst_3 [0] : vector<16x128xf32> to vector<128xf32>
    %16 = vector.shape_cast %15 : vector<128xf32> to vector<1x128xf32>
    %17 = vector.broadcast %4 : vector<1x1xf32> to vector<1x128xf32>
    %18 = arith.addf %16, %17 : vector<1x128xf32>
    %c0_4 = arith.constant 0 : index
    %c0_5 = arith.constant 0 : index
    %19 = vector.load %arg3[%c0_4, %c0_5] : memref<1x128xf32, #tpu.memory_space<vmem>>, vector<1x128xf32>
    tpu.vector_store %arg3[%c0_4, %c0_5], %18 {strides = array<i32>} : memref<1x128xf32, #tpu.memory_space<vmem>>, vector<1x128xf32>,
    return
  }
  func.func @transform_0(%arg0: i32) -> (i32, i32) {
    %c0_i32 = arith.constant 0 : i32
    %c0_i32_0 = arith.constant 0 : i32
    return %c0_i32, %arg0 : i32, i32
  }
  func.func @transform_1(%arg0: i32) -> (i32, i32) {
    %c0_i32 = arith.constant 0 : i32
    %c0_i32_0 = arith.constant 0 : i32
    %c0_i32_1 = arith.constant 0 : i32
    return %c0_i32, %c0_i32_0 : i32, i32
  }
  func.func @transform_2(%arg0: i32) -> (i32, i32) {
    %c0_i32 = arith.constant 0 : i32
    %c0_i32_0 = arith.constant 0 : i32
    return %c0_i32, %arg0 : i32, i32
  }
}

</mosaic_0001>

<llo_original>
// kernel: tpu_custom_call.1
$region0: #{tpu_custom_call.1}
  #allocation0 [shape = 'u32[]', space=smem, size = 0x4, offset = 0x4, fixed_abs, tag = 'smem constant byte address 0x4 - core index']
  #allocation1 [shape = 'u32[144,128]{1,0:T(1,128)}', space=vmem, size = 0x12000, scoped, tag = 'internal scratch']
  %s0 = inlined_call_operand.vmem [shape: f32[1,128], index: 0, kind: input, shape index: {}]
  %s1 = inlined_call_operand.vmem [shape: f32[16,4], index: 1, kind: input, shape index: {}]
  %s2 = inlined_call_operand.hbm [shape: f32[1,128], index: 2, kind: output, shape index: {}]
  %s3 = sld [smem:[#allocation0]]
  $region18: #{tpu_custom_call.1} parent=0
    _
  %s5 = ssub.s32 1, %s3
  %s6 = scalar_select 0, %s5, %s3
  $region1: #{tpu_custom_call.1} parent=0
    #allocation2 [shape = 'u8[512]{0}', space=vmem, size = 0x400, scoped, tag = 'output window, operand 0, single buffered']
    #allocation3 [shape = 's32[1]{0}', space=sflag, size = 0x4, scoped, tag = 'scoped memory for tpu_custom_call.1']
    %7 = vsyncpa [#allocation3], 0
    // Predicated region
    $region2: #{tpu_custom_call.1} parent=1 // pred_check
      _
    $region3: #{tpu_custom_call.1} parent=1 // pred_check_branch
      %9 = sbr.rel (0) target = $region5
    $region4: #{tpu_custom_call.1} parent=1 // pred_region
      _
    $region5: #{tpu_custom_call.1} parent=1 // pred_fallthru
      _
    // Predicated region
    $region6: #{tpu_custom_call.1} parent=1 // pred_check
      _
    $region7: #{tpu_custom_call.1} parent=1 // pred_check_branch
      %11 = sbr.rel (0) target = $region9
    $region8: #{tpu_custom_call.1} parent=1 // pred_region
      _
    $region9: #{tpu_custom_call.1} parent=1 // pred_fallthru
      _
    %v12 = vld [vmem:[%s1] sm:$0xff]
    %v13 = vld [vmem:[%s1 + $0x8] sm:$0xff]
    %v14 = vld [vmem:[%s0] sm:$0x1]
    %16 = vset.pattern.permute.xlu0 0
    %17 = vperm.xlu0 %16, %v12
    %v18 = vpop.permute.xlu0 %17
    %21 = vset.pattern.permute.xlu0 0
    %22 = vperm.xlu0 %21, %v13
    %v23 = vpop.permute.xlu0 %22
    %v26 = vlaneseq
    %v27 = vshrl.u32 %v26, 7
    %v28 = vsub.s32 0, %v27
    %v29 = vrot.slane %v14, %v28
    %v31 = vmul.f32 %v18, %v29
    %v32 = vmul.f32 %v23, %v29
    %33 = vset.pattern.permute.xlu0 1
    %34 = vperm.xlu0 %33, %v12
    %v35 = vpop.permute.xlu0 %34
    %37 = vset.pattern.permute.xlu0 1
    %38 = vperm.xlu0 %37, %v13
    %v39 = vpop.permute.xlu0 %38
    %v41 = vadd.f32 %v31, %v35
    %v42 = vadd.f32 %v32, %v39
    %v43 = vmax.f32 %v41, 0.0
    %v44 = vmax.f32 %v42, 0.0
    %45 = vset.pattern.permute.xlu0 2
    %46 = vperm.xlu0 %45, %v12
    %v47 = vpop.permute.xlu0 %46
    %49 = vset.pattern.permute.xlu0 2
    %50 = vperm.xlu0 %49, %v13
    %v51 = vpop.permute.xlu0 %50
    %v53 = vmul.f32 %v47, %v43
    %v54 = vmul.f32 %v51, %v44
    %v55 = vadd.f32 %v53, %v54
    %v56 = vrot.slane %v55, 4
    %v57 = vadd.f32 %v55, %v56
    %v58 = vrot.slane %v57, 2
    %v59 = vadd.f32 %v57, %v58
    %v60 = vrot.slane %v59, 1
    %v61 = vadd.f32 %v59, %v60
    %62 = vset.pattern.permute.xlu0 3
    %63 = vperm.xlu0 %62, %v12
    %v64 = vpop.permute.xlu0 %63
    %v66 = vadd.f32 %v61, %v64
    %67 = vst [vmem:[#allocation2] sm:$0x1] %v66
    // Predicated region
    $region10: #{tpu_custom_call.1} parent=1 // pred_check
      _
    $region11: #{tpu_custom_call.1} parent=1 // pred_check_branch
      %69 = sbr.rel (0) target = $region13
    $region12: #{tpu_custom_call.1} parent=1 // pred_region
      %s71 = ssub.s32 16, 16
      %72 = vsyncadd [#allocation3], %s71
      %s74 = sshll.u32 [#allocation2], 4
      %s75 = int_to_ptr.vmem [resolvable:$true] %s74
      %77 = dma.vmem_to_hbm [thread:$0]  %s75, 16, %s2, [#allocation3]
    $region13: #{tpu_custom_call.1} parent=1 // pred_fallthru
      _
    // Predicated region
    $region14: #{tpu_custom_call.1} parent=1 // pred_check
      _
    $region15: #{tpu_custom_call.1} parent=1 // pred_check_branch
      %79 = sbr.rel (0) target = $region17
    $region16: #{tpu_custom_call.1} parent=1 // pred_region
      %80 = dma.done [#allocation3], 16
    $region17: #{tpu_custom_call.1} parent=1 // pred_fallthru
      _
    %81 = vsyncpa [#allocation3], 1

</llo_original>
